<compile_context>
chip_gen: v7x
topology: tpu7x:2x2x1
jax: 0.10.0
libtpu: 0.0.40
codegen_flags: <defaults>
</compile_context>

<pallas_src>
import functools

import jax
import jax.numpy as jnp
from jax import lax
from jax.experimental import pallas as pl
from jax.experimental.pallas import tpu as pltpu


def _round_up(x, m):
    return ((x + m - 1) // m) * m


def _tile_for(dim, pref):
    """Return (tile, padded_dim). Full-extent block if dim fits, else
    pref-sized blocks over a dim padded up to a multiple of pref."""
    if dim <= pref:
        return dim, dim
    return pref, _round_up(dim, pref)


# ----------------------------------------------------------------------------
# Pallas kernels: y = x @ W^T + b (+ optional LeakyReLU).  W stays in PyTorch
# (out, in) layout; the contraction is expressed as a transposed-RHS matmul so
# no wrapper-side weight transpose is needed.  Weights may be bf16 (x is cast
# to the weight dtype for the MXU; accumulation stays f32).
# ----------------------------------------------------------------------------
def _linear_kernel_single(x_ref, w_ref, b_ref, o_ref, *, act):
    xv = x_ref[...]
    wv = w_ref[...]
    if wv.dtype != xv.dtype:
        xv = xv.astype(wv.dtype)
    y = lax.dot_general(xv, wv, (((1,), (1,)), ((), ())),
                        preferred_element_type=jnp.float32)
    y = y + b_ref[...]
    if act == "leaky_relu":
        y = jnp.where(y > 0, y, 0.1 * y)
    o_ref[...] = y.astype(o_ref.dtype)


def _linear_kernel_multi(x_ref, w_ref, b_ref, o_ref, acc_ref, *, act):
    @pl.when(pl.program_id(2) == 0)
    def _():
        acc_ref[...] = jnp.zeros_like(acc_ref)

    xv = x_ref[...]
    wv = w_ref[...]
    if wv.dtype != xv.dtype:
        xv = xv.astype(wv.dtype)
    acc_ref[...] += lax.dot_general(xv, wv, (((1,), (1,)), ((), ())),
                                    preferred_element_type=jnp.float32)

    @pl.when(pl.program_id(2) == pl.num_programs(2) - 1)
    def _():
        y = acc_ref[...] + b_ref[...]
        if act == "leaky_relu":
            y = jnp.where(y > 0, y, 0.1 * y)
        o_ref[...] = y.astype(o_ref.dtype)


def matmul_bias_act(x, w_nk, b, act=None, *, tm_pref=256, tn_pref=2048,
                    tk_pref=2048, vmem_limit_bytes=48 * 1024 * 1024):
    """y = x @ w_nk.T + b with w_nk in (out, in) layout, optional LeakyReLU."""
    M, K = x.shape
    N, K2 = w_nk.shape
    assert K == K2 and b.shape == (N,)

    # N: round up to a multiple of 128 so output stores are lane-dense.
    Np = _round_up(N, 128)
    if Np <= tn_pref:
        tn = Np
    else:
        tn = tn_pref
        Np = _round_up(Np, tn)
    tm, Mp = _tile_for(M, tm_pref)
    tk, Kp = _tile_for(K, tk_pref)

    # Zero-pad operands (K/M padding is numerically exact; N padding sliced off).
    if Mp != M or Kp != K:
        x = jnp.pad(x, ((0, Mp - M), (0, Kp - K)))
    w = w_nk
    if Np != N or Kp != K:
        w = jnp.pad(w, ((0, Np - N), (0, Kp - K)))
    if Np != N:
        b = jnp.pad(b, (0, Np - N))
    b2 = b.reshape(1, Np).astype(jnp.float32)

    grid = (Mp // tm, Np // tn, Kp // tk)
    k_steps = grid[2]

    if k_steps == 1:
        kernel = functools.partial(_linear_kernel_single, act=act)
        scratch = []
    else:
        kernel = functools.partial(_linear_kernel_multi, act=act)
        scratch = [pltpu.VMEM((tm, tn), jnp.float32)]

    cost = pl.CostEstimate(
        flops=2 * Mp * Np * Kp,
        transcendentals=0,
        bytes_accessed=int(x.size) * x.dtype.itemsize
        + int(w.size) * w.dtype.itemsize
        + int(b2.size) * 4 + Mp * Np * 4,
    )

    out = pl.pallas_call(
        kernel,
        out_shape=jax.ShapeDtypeStruct((Mp, Np), jnp.float32),
        grid=grid,
        in_specs=[
            pl.BlockSpec((tm, tk), lambda i, j, k: (i, k)),
            pl.BlockSpec((tn, tk), lambda i, j, k: (j, k)),   # (out, in) weight
            pl.BlockSpec((1, tn), lambda i, j, k: (0, j)),
        ],
        out_specs=pl.BlockSpec((tm, tn), lambda i, j, k: (i, j)),
        scratch_shapes=scratch,
        compiler_params=pltpu.CompilerParams(
            dimension_semantics=("parallel", "parallel", "arbitrary"),
            vmem_limit_bytes=vmem_limit_bytes),
        cost_estimate=cost,
    )(x, w, b2)

    if Mp != M or Np != N:
        out = out[:M, :N]
    return out


# ----------------------------------------------------------------------------
# Pallas kernel: AdaptiveAvgPool1d (uniform-window case, L % target == 0).
# Window axis is pre-transposed onto the sublane axis (B, k, T); the kernel is
# gridded over T so it pipelines and stays within VMEM for real sizes.
# ----------------------------------------------------------------------------
def _adaptive_avgpool_kernel(x_ref, o_ref):
    o_ref[...] = jnp.mean(x_ref[...], axis=1)


def adaptive_avg_pool1d(x, target, *, t_block=1024):
    B, L = x.shape
    if L == target:
        return x
    # TODO(synk): non-uniform windows (L % target != 0) are not implemented;
    # this model's shapes keep L a multiple of the target.
    assert L % target == 0
    k = L // target
    xp = x.reshape(B, target, k).transpose(0, 2, 1)  # (B, k, T)
    tT = t_block if target % t_block == 0 else target
    grid = (target // tT,)
    return pl.pallas_call(
        _adaptive_avgpool_kernel,
        out_shape=jax.ShapeDtypeStruct((B, target), jnp.float32),
        grid=grid,
        in_specs=[pl.BlockSpec((B, k, tT), lambda i: (0, 0, i))],
        out_specs=pl.BlockSpec((B, tT), lambda i: (0, i)),
        compiler_params=pltpu.CompilerParams(
            dimension_semantics=("parallel",)),
    )(xp)


# ----------------------------------------------------------------------------
# Backbone stage: 3x3 conv (stride 1, pad 1) + LeakyReLU(0.1), via im2col glue
# feeding the Pallas matmul kernel (single grid step: K=9*Cin, N=Cout tiny).
# TODO(synk): make_layers(darknet, 3) is not defined in the provided snippet;
# this single darknet-style conv stage stands in for the full backbone.
# TODO(synk): for real backbone sizes, replace host-side im2col with in-kernel
# shifted loads (memory_space=pl.ANY + per-tap K accumulation) to avoid
# materializing the 9x patches array in HBM.
# ----------------------------------------------------------------------------
def conv3x3_leakyrelu(x_nchw, w_nk, b):
    B, Cin, H, W = x_nchw.shape
    Cout = w_nk.shape[0]
    x_nhwc = jnp.transpose(x_nchw, (0, 2, 3, 1))
    xp = jnp.pad(x_nhwc, ((0, 0), (1, 1), (1, 1), (0, 0)))
    cols = []
    for dy in range(3):
        for dx in range(3):
            cols.append(xp[:, dy:dy + H, dx:dx + W, :])
    patches = jnp.concatenate(cols, axis=-1).reshape(B * H * W, 9 * Cin)
    y = matmul_bias_act(patches, w_nk, b, act="leaky_relu",
                        tm_pref=512, tn_pref=512, tk_pref=512)
    y = y.reshape(B, H, W, Cout)
    return jnp.transpose(y, (0, 3, 1, 2))  # back to NCHW


# ----------------------------------------------------------------------------
# Full Yolov1 forward.
# ----------------------------------------------------------------------------
def yolov1_forward(x, params, *, classes, split_size, num_boxes):
    feat = conv3x3_leakyrelu(x, params["conv_w_nk"], params["conv_b"])  # backbone
    B = feat.shape[0]
    flat = feat.reshape(B, -1)                    # torch.flatten(x, 1), NCHW order
    pooled = adaptive_avg_pool1d(flat, split_size ** 2 * 1024)          # avgpool
    h = matmul_bias_act(pooled, params["l1_w"], params["l1_b"])         # l1 (bf16 stream)
    # TODO(synk): nn.Dropout1d(p) is identity in eval mode; training-mode
    # channel dropout is not modeled here (forward is deterministic).
    out = matmul_bias_act(h, params["l2_w"], params["l2_b"],
                          tk_pref=4096)                                 # l2, single step
    out = out.reshape(-1, split_size, split_size, classes + 5 * num_boxes)
    return out


def init_params(key, cin, cback, split_size, classes, num_boxes):
    feat_dim = split_size ** 2 * 1024
    out_dim = split_size * split_size * (classes + 5 * num_boxes)
    ks = jax.random.split(key, 6)

    def u(k, shape, fan_in):
        lim = 1.0 / jnp.sqrt(jnp.float32(fan_in))
        return jax.random.uniform(k, shape, jnp.float32, -lim, lim)

    return dict(
        conv_w=u(ks[0], (cback, cin, 3, 3), cin * 9),
        conv_b=u(ks[1], (cback,), cin * 9),
        l1_w=u(ks[2], (4096, feat_dim), feat_dim),   # PyTorch Linear: (out, in)
        l1_b=u(ks[3], (4096,), feat_dim),
        l2_w=u(ks[4], (out_dim, 4096), 4096),
        l2_b=u(ks[5], (out_dim,), 4096),
    )


def prepare_params(params):
    """One-time inference prep: (out, kh*kw*cin) conv weight for the im2col
    matmul, and bf16 streaming copies of the big Linear weights (kept in
    PyTorch (out, in) layout -- no transpose, ever)."""
    cout, cin, kh, kw = params["conv_w"].shape
    conv_w_nk = jnp.transpose(params["conv_w"], (0, 2, 3, 1)).reshape(
        cout, kh * kw * cin)
    return dict(
        conv_w_nk=conv_w_nk,
        conv_b=params["conv_b"],
        l1_w=params["l1_w"].astype(jnp.bfloat16),
        l1_b=params["l1_b"],
        l2_w=params["l2_w"].astype(jnp.bfloat16),
        l2_b=params["l2_b"],
    )


if __name__ == "__main__":
    key = jax.random.PRNGKey(0)
    k_x, k_p = jax.random.split(key)

    # Small shapes consistent with the module: split_size=2 so the l1 input is
    # split_size**2 * 1024 = 4096; the backbone stage outputs 128 channels
    # (lane-dense) at 16x16 => flattened length 32768, adaptively pooled
    # (window 8) down to 4096.
    B, Cin, H, W = 2, 3, 16, 16
    classes, split_size, num_boxes = 20, 2, 2
    Cback = 128

    params = init_params(k_p, Cin, Cback, split_size, classes, num_boxes)
    prepared = prepare_params(params)
    x = jax.random.normal(k_x, (B, Cin, H, W), jnp.float32)

    out = yolov1_forward(x, prepared, classes=classes, split_size=split_size,
                         num_boxes=num_boxes)
    jax.block_until_ready(out)

    expected = (B, split_size, split_size, classes + 5 * num_boxes)
    assert out.shape == expected, (out.shape, expected)
    assert out.dtype == jnp.float32
    assert bool(jnp.all(jnp.isfinite(out)))
    print("KERNEL_OK")
</pallas_src>

<mosaic_0001>
module attributes {stable_mosaic.version = 11 : i64} {
  func.func @_linear_kernel_single(%arg0: i32, %arg1: i32, %arg2: i32, %arg3: memref<512x27xf32, #tpu.memory_space<vmem>>, %arg4: memref<128x27xf32, #tpu.memory_space<vmem>>, %arg5: memref<1x128xf32, #tpu.memory_space<vmem>>, %arg6: memref<512x128xf32, #tpu.memory_space<vmem>>) attributes {dimension_semantics = [#tpu.dimension_semantics<parallel>, #tpu.dimension_semantics<parallel>, #tpu.dimension_semantics<arbitrary>], iteration_bounds = array<i64: 1, 1, 1>, scalar_prefetch = 0 : i64, scratch_operands = 0 : i64, tpu.core_type = #tpu.core_type<tc>, window_params = [{transform_indices = @transform_0, window_bounds = array<i64: 512, 27>}, {transform_indices = @transform_1, window_bounds = array<i64: 128, 27>}, {transform_indices = @transform_2, window_bounds = array<i64: 1, 128>}, {transform_indices = @transform_3, window_bounds = array<i64: 512, 128>}]} {
    %c0 = arith.constant 0 : index
    %c0_0 = arith.constant 0 : index
    %0 = vector.load %arg3[%c0, %c0_0] : memref<512x27xf32, #tpu.memory_space<vmem>>, vector<512x27xf32>
    %c0_1 = arith.constant 0 : index
    %c0_2 = arith.constant 0 : index
    %1 = vector.load %arg4[%c0_1, %c0_2] : memref<128x27xf32, #tpu.memory_space<vmem>>, vector<128x27xf32>
    %cst = arith.constant dense<0.000000e+00> : vector<512x128xf32>
    %2 = tpu.matmul %0, %1, %cst {dimension_numbers = #tpu.dot_dimension_numbers<[1], [1], [0], [0], [0, 0, 1, 0], [], []>} : vector<512x27xf32>, vector<128x27xf32>, vector<512x128xf32> -> vector<512x128xf32>
    %c0_3 = arith.constant 0 : index
    %c0_4 = arith.constant 0 : index
    %3 = vector.load %arg5[%c0_3, %c0_4] : memref<1x128xf32, #tpu.memory_space<vmem>>, vector<1x128xf32>
    %4 = vector.broadcast %3 : vector<1x128xf32> to vector<512x128xf32>
    %5 = arith.addf %2, %4 : vector<512x128xf32>
    %cst_5 = arith.constant 0.000000e+00 : f32
    %6 = vector.broadcast %cst_5 : f32 to vector<512x128xf32>
    %7 = arith.cmpf ogt, %5, %6 : vector<512x128xf32>
    %cst_6 = arith.constant 1.000000e-01 : f32
    %8 = vector.broadcast %cst_6 : f32 to vector<512x128xf32>
    %9 = arith.mulf %8, %5 : vector<512x128xf32>
    %10 = arith.select %7, %5, %9 : vector<512x128xi1>, vector<512x128xf32>
    %c0_7 = arith.constant 0 : index
    %c0_8 = arith.constant 0 : index
    %11 = vector.load %arg6[%c0_7, %c0_8] : memref<512x128xf32, #tpu.memory_space<vmem>>, vector<512x128xf32>
    tpu.vector_store %arg6[%c0_7, %c0_8], %10 {strides = array<i32>} : memref<512x128xf32, #tpu.memory_space<vmem>>, vector<512x128xf32>,
    return
  }
  func.func @transform_0(%arg0: i32, %arg1: i32, %arg2: i32) -> (i32, i32) {
    %c0_i32 = arith.constant 0 : i32
    return %arg0, %arg2 : i32, i32
  }
  func.func @transform_1(%arg0: i32, %arg1: i32, %arg2: i32) -> (i32, i32) {
    %c0_i32 = arith.constant 0 : i32
    return %arg1, %arg2 : i32, i32
  }
  func.func @transform_2(%arg0: i32, %arg1: i32, %arg2: i32) -> (i32, i32) {
    %c0_i32 = arith.constant 0 : i32
    %c0_i32_0 = arith.constant 0 : i32
    return %c0_i32, %arg1 : i32, i32
  }
  func.func @transform_3(%arg0: i32, %arg1: i32, %arg2: i32) -> (i32, i32) {
    %c0_i32 = arith.constant 0 : i32
    return %arg0, %arg1 : i32, i32
  }
}

</mosaic_0001>

<llo_original>
// kernel: tpu_custom_call.1
$region0: #{tpu_custom_call.1}
  #allocation0 [shape = 'u32[]', space=smem, size = 0x4, offset = 0x4, fixed_abs, tag = 'smem constant byte address 0x4 - core index']
  #allocation1 [shape = 'u32[144,128]{1,0:T(1,128)}', space=vmem, size = 0x12000, scoped, tag = 'internal scratch']
  %s0 = inlined_call_operand.vmem [shape: f32[512,27], index: 0, kind: input, shape index: {}]
  %s1 = inlined_call_operand.vmem [shape: f32[128,27], index: 1, kind: input, shape index: {}]
  %s2 = inlined_call_operand.vmem [shape: f32[1,128], index: 2, kind: input, shape index: {}]
  %s3 = inlined_call_operand.hbm [shape: f32[512,128], index: 3, kind: output, shape index: {}]
  %s4 = sld [smem:[#allocation0]]
  $region22: #{tpu_custom_call.1} parent=0
    _
  %s6 = ssub.s32 1, %s4
  %s7 = scalar_select 0, %s6, %s4
  $region1: #{tpu_custom_call.1} parent=0
    #allocation2 [shape = 'u8[262144]{0}', space=vmem, size = 0x40000, scoped, tag = 'output window, operand 0, single buffered']
    #allocation3 [shape = 's32[1]{0}', space=sflag, size = 0x4, scoped, tag = 'scoped memory for tpu_custom_call.1']
    %8 = vsyncpa [#allocation3], 0
    // Predicated region
    $region2: #{tpu_custom_call.1} parent=1 // pred_check
      _
    $region3: #{tpu_custom_call.1} parent=1 // pred_check_branch
      %10 = sbr.rel (0) target = $region5
    $region4: #{tpu_custom_call.1} parent=1 // pred_region
      _
    $region5: #{tpu_custom_call.1} parent=1 // pred_fallthru
      _
    // Predicated region
    $region6: #{tpu_custom_call.1} parent=1 // pred_check
      _
    $region7: #{tpu_custom_call.1} parent=1 // pred_check_branch
      %12 = sbr.rel (0) target = $region9
    $region8: #{tpu_custom_call.1} parent=1 // pred_region
      _
    $region9: #{tpu_custom_call.1} parent=1 // pred_fallthru
      _
    // Predicated region
    $region10: #{tpu_custom_call.1} parent=1 // pred_check
      _
    $region11: #{tpu_custom_call.1} parent=1 // pred_check_branch
      %14 = sbr.rel (0) target = $region13
    $region12: #{tpu_custom_call.1} parent=1 // pred_region
      _
    $region13: #{tpu_custom_call.1} parent=1 // pred_fallthru
      _
    %v15 = vld [vmem:[%s0] sm:$0xff]
    %v16 = vld [vmem:[%s0 + $0x8] sm:$0xff]
    %v17 = vld [vmem:[%s0 + $0x10] sm:$0xff]
    %v18 = vld [vmem:[%s0 + $0x18] sm:$0xff]
    %v19 = vld [vmem:[%s0 + $0x20] sm:$0xff]
    %v20 = vld [vmem:[%s0 + $0x28] sm:$0xff]
    %v21 = vld [vmem:[%s0 + $0x30] sm:$0xff]
    %v22 = vld [vmem:[%s0 + $0x38] sm:$0xff]
    %v23 = vld [vmem:[%s0 + $0x40] sm:$0xff]
    %v24 = vld [vmem:[%s0 + $0x48] sm:$0xff]
    %v25 = vld [vmem:[%s0 + $0x50] sm:$0xff]
    %v26 = vld [vmem:[%s0 + $0x58] sm:$0xff]
    %v27 = vld [vmem:[%s0 + $0x60] sm:$0xff]
    %v28 = vld [vmem:[%s0 + $0x68] sm:$0xff]
    %v29 = vld [vmem:[%s0 + $0x70] sm:$0xff]
    %v30 = vld [vmem:[%s0 + $0x78] sm:$0xff]
    %v31 = vld [vmem:[%s0 + $0x80] sm:$0xff]
    %v32 = vld [vmem:[%s0 + $0x88] sm:$0xff]
    %v33 = vld [vmem:[%s0 + $0x90] sm:$0xff]
    %v34 = vld [vmem:[%s0 + $0x98] sm:$0xff]
    %v35 = vld [vmem:[%s0 + $0xa0] sm:$0xff]
    %v36 = vld [vmem:[%s0 + $0xa8] sm:$0xff]
    %v37 = vld [vmem:[%s0 + $0xb0] sm:$0xff]
    %v38 = vld [vmem:[%s0 + $0xb8] sm:$0xff]
    %v39 = vld [vmem:[%s0 + $0xc0] sm:$0xff]
    %v40 = vld [vmem:[%s0 + $0xc8] sm:$0xff]
    %v41 = vld [vmem:[%s0 + $0xd0] sm:$0xff]
    %v42 = vld [vmem:[%s0 + $0xd8] sm:$0xff]
    %v43 = vld [vmem:[%s0 + $0xe0] sm:$0xff]
    %v44 = vld [vmem:[%s0 + $0xe8] sm:$0xff]
    %v45 = vld [vmem:[%s0 + $0xf0] sm:$0xff]
    %v46 = vld [vmem:[%s0 + $0xf8] sm:$0xff]
    %v47 = vld [vmem:[%s0 + $0x100] sm:$0xff]
    %v48 = vld [vmem:[%s0 + $0x108] sm:$0xff]
    %v49 = vld [vmem:[%s0 + $0x110] sm:$0xff]
    %v50 = vld [vmem:[%s0 + $0x118] sm:$0xff]
    %v51 = vld [vmem:[%s0 + $0x120] sm:$0xff]
    %v52 = vld [vmem:[%s0 + $0x128] sm:$0xff]
    %v53 = vld [vmem:[%s0 + $0x130] sm:$0xff]
    %v54 = vld [vmem:[%s0 + $0x138] sm:$0xff]
    %v55 = vld [vmem:[%s0 + $0x140] sm:$0xff]
    %v56 = vld [vmem:[%s0 + $0x148] sm:$0xff]
    %v57 = vld [vmem:[%s0 + $0x150] sm:$0xff]
    %v58 = vld [vmem:[%s0 + $0x158] sm:$0xff]
    %v59 = vld [vmem:[%s0 + $0x160] sm:$0xff]
    %v60 = vld [vmem:[%s0 + $0x168] sm:$0xff]
    %v61 = vld [vmem:[%s0 + $0x170] sm:$0xff]
    %v62 = vld [vmem:[%s0 + $0x178] sm:$0xff]
    %v63 = vld [vmem:[%s0 + $0x180] sm:$0xff]
    %v64 = vld [vmem:[%s0 + $0x188] sm:$0xff]
    %v65 = vld [vmem:[%s0 + $0x190] sm:$0xff]
    %v66 = vld [vmem:[%s0 + $0x198] sm:$0xff]
    %v67 = vld [vmem:[%s0 + $0x1a0] sm:$0xff]
    %v68 = vld [vmem:[%s0 + $0x1a8] sm:$0xff]
    %v69 = vld [vmem:[%s0 + $0x1b0] sm:$0xff]
    %v70 = vld [vmem:[%s0 + $0x1b8] sm:$0xff]
    %v71 = vld [vmem:[%s0 + $0x1c0] sm:$0xff]
    %v72 = vld [vmem:[%s0 + $0x1c8] sm:$0xff]
    %v73 = vld [vmem:[%s0 + $0x1d0] sm:$0xff]
    %v74 = vld [vmem:[%s0 + $0x1d8] sm:$0xff]
    %v75 = vld [vmem:[%s0 + $0x1e0] sm:$0xff]
    %v76 = vld [vmem:[%s0 + $0x1e8] sm:$0xff]
    %v77 = vld [vmem:[%s0 + $0x1f0] sm:$0xff]
    %v78 = vld [vmem:[%s0 + $0x1f8] sm:$0xff]
    %v79 = vld [vmem:[%s1] sm:$0xff]
    %v80 = vld [vmem:[%s1 + $0x8] sm:$0xff]
    %v81 = vld [vmem:[%s1 + $0x10] sm:$0xff]
    %v82 = vld [vmem:[%s1 + $0x18] sm:$0xff]
    %v83 = vld [vmem:[%s1 + $0x20] sm:$0xff]
    %v84 = vld [vmem:[%s1 + $0x28] sm:$0xff]
    %v85 = vld [vmem:[%s1 + $0x30] sm:$0xff]
    %v86 = vld [vmem:[%s1 + $0x38] sm:$0xff]
    %v87 = vld [vmem:[%s1 + $0x40] sm:$0xff]
    %v88 = vld [vmem:[%s1 + $0x48] sm:$0xff]
    %v89 = vld [vmem:[%s1 + $0x50] sm:$0xff]
    %v90 = vld [vmem:[%s1 + $0x58] sm:$0xff]
    %v91 = vld [vmem:[%s1 + $0x60] sm:$0xff]
    %v92 = vld [vmem:[%s1 + $0x68] sm:$0xff]
    %v93 = vld [vmem:[%s1 + $0x70] sm:$0xff]
    %v94 = vld [vmem:[%s1 + $0x78] sm:$0xff]
    %v95 = vld [vmem:[%s2] sm:$0x1]
    %v97 = vlaneseq
    %v98 = vshrl.u32 %v97, 7
    %v99 = vsub.s32 0, %v98
    %v100 = vrot.slane %v95, %v99
    %vm102 = vcmask 220160
    %v104 = vsel %vm102, %v15, 0
    %v107 = vsel %vm102, %v16, 0
    %v110 = vsel %vm102, %v17, 0
    %v113 = vsel %vm102, %v18, 0
    %v116 = vsel %vm102, %v19, 0
    %v119 = vsel %vm102, %v20, 0
    %v122 = vsel %vm102, %v21, 0
    %v125 = vsel %vm102, %v22, 0
    %v128 = vsel %vm102, %v23, 0
    %v131 = vsel %vm102, %v24, 0
    %v134 = vsel %vm102, %v25, 0
    %v137 = vsel %vm102, %v26, 0
    %v140 = vsel %vm102, %v27, 0
    %v143 = vsel %vm102, %v28, 0
    %v146 = vsel %vm102, %v29, 0
    %v149 = vsel %vm102, %v30, 0
    %v152 = vsel %vm102, %v31, 0
    %v155 = vsel %vm102, %v32, 0
    %v158 = vsel %vm102, %v33, 0
    %v161 = vsel %vm102, %v34, 0
    %v164 = vsel %vm102, %v35, 0
    %v167 = vsel %vm102, %v36, 0
    %v170 = vsel %vm102, %v37, 0
    %v173 = vsel %vm102, %v38, 0
    %v176 = vsel %vm102, %v39, 0
    %v179 = vsel %vm102, %v40, 0
    %v182 = vsel %vm102, %v41, 0
    %v185 = vsel %vm102, %v42, 0
    %v188 = vsel %vm102, %v43, 0
    %v191 = vsel %vm102, %v44, 0
    %v194 = vsel %vm102, %v45, 0
    %v197 = vsel %vm102, %v46, 0
    %v200 = vsel %vm102, %v47, 0
    %v203 = vsel %vm102, %v48, 0
    %v206 = vsel %vm102, %v49, 0
    %v209 = vsel %vm102, %v50, 0
    %v212 = vsel %vm102, %v51, 0
    %v215 = vsel %vm102, %v52, 0
    %v218 = vsel %vm102, %v53, 0
    %v221 = vsel %vm102, %v54, 0
    %v224 = vsel %vm102, %v55, 0
    %v227 = vsel %vm102, %v56, 0
    %v230 = vsel %vm102, %v57, 0
    %v233 = vsel %vm102, %v58, 0
    %v236 = vsel %vm102, %v59, 0
    %v239 = vsel %vm102, %v60, 0
    %v242 = vsel %vm102, %v61, 0
    %v245 = vsel %vm102, %v62, 0
    %v248 = vsel %vm102, %v63, 0
    %v251 = vsel %vm102, %v64, 0
    %v254 = vsel %vm102, %v65, 0
    %v257 = vsel %vm102, %v66, 0
    %v260 = vsel %vm102, %v67, 0
    %v263 = vsel %vm102, %v68, 0
    %v266 = vsel %vm102, %v69, 0
    %v269 = vsel %vm102, %v70, 0
    %v272 = vsel %vm102, %v71, 0
    %v275 = vsel %vm102, %v72, 0
    %v278 = vsel %vm102, %v73, 0
    %v281 = vsel %vm102, %v74, 0
    %v284 = vsel %vm102, %v75, 0
    %v287 = vsel %vm102, %v76, 0
    %v290 = vsel %vm102, %v77, 0
    %v293 = vsel %vm102, %v78, 0
    %v296 = vsel %vm102, %v79, 0
    %v299 = vsel %vm102, %v80, 0
    %v302 = vsel %vm102, %v81, 0
    %v305 = vsel %vm102, %v82, 0
    %v308 = vsel %vm102, %v83, 0
    %v311 = vsel %vm102, %v84, 0
    %v314 = vsel %vm102, %v85, 0
    %v317 = vsel %vm102, %v86, 0
    %v320 = vsel %vm102, %v87, 0
    %v323 = vsel %vm102, %v88, 0
    %v326 = vsel %vm102, %v89, 0
    %v329 = vsel %vm102, %v90, 0
    %v332 = vsel %vm102, %v91, 0
    %v335 = vsel %vm102, %v92, 0
    %v338 = vsel %vm102, %v93, 0
    %v341 = vsel %vm102, %v94, 0
    %343 = vmatprep.subr.mxu0 0.0
    %344 = vmatpush1.xpose.msra.mxu0 %v296
    %345 = vmatprep.subr.mxu0 0.0
    %346 = vmatpush1.xpose.msra.mxu0 %v299
    %347 = vmatprep.subr.mxu0 0.0
    %348 = vmatpush1.xpose.msra.mxu0 %v302
    %349 = vmatprep.subr.mxu0 0.0
    %350 = vmatpush1.xpose.msra.mxu0 %v305
    %351 = vmatprep.subr.mxu0 0.0
    %352 = vmatpush1.xpose.msra.mxu0 %v308
    %353 = vmatprep.subr.mxu0 0.0
    %354 = vmatpush1.xpose.msra.mxu0 %v311
    %355 = vmatprep.subr.mxu0 0.0
    %356 = vmatpush1.xpose.msra.mxu0 %v314
    %357 = vmatprep.subr.mxu0 0.0
    %358 = vmatpush1.xpose.msra.mxu0 %v317
    %359 = vmatprep.subr.mxu0 0.0
    %360 = vmatpush1.xpose.msra.mxu0 %v320
    %361 = vmatprep.subr.mxu0 0.0
    %362 = vmatpush1.xpose.msra.mxu0 %v323
    %363 = vmatprep.subr.mxu0 0.0
    %364 = vmatpush1.xpose.msra.mxu0 %v326
    %365 = vmatprep.subr.mxu0 0.0
    %366 = vmatpush1.xpose.msra.mxu0 %v329
    %367 = vmatprep.subr.mxu0 0.0
    %368 = vmatpush1.xpose.msra.mxu0 %v332
    %369 = vmatprep.subr.mxu0 0.0
    %370 = vmatpush1.xpose.msra.mxu0 %v335
    %371 = vmatprep.subr.mxu0 0.0
    %372 = vmatpush1.xpose.msra.mxu0 %v338
    %373 = vmatprep.subr.mxu0 0.0
    %374 = vmatpush1.xpose.msra.mxu0 %v341
    %375 = vmatprep.subr.mxu0 0.0
    %376 = vmatpush1.xpose.msra.mxu0 0.0
    %377 = vmatprep.subr.mxu0 0.0
    %378 = vmatpush1.xpose.msra.mxu0 0.0
    %379 = vmatprep.subr.mxu0 0.0
    %380 = vmatpush1.xpose.msra.mxu0 0.0
    %381 = vmatprep.subr.mxu0 0.0
    %382 = vmatpush1.xpose.msra.mxu0 0.0
    %383 = vmatprep.subr.mxu0 0.0
    %384 = vmatpush1.xpose.msra.mxu0 0.0
    %385 = vmatprep.subr.mxu0 0.0
    %386 = vmatpush1.xpose.msra.mxu0 0.0
    %387 = vmatprep.subr.mxu0 0.0
    %388 = vmatpush1.xpose.msra.mxu0 0.0
    %389 = vmatprep.subr.mxu0 0.0
    %390 = vmatpush1.xpose.msra.mxu0 0.0
    %391 = vmatprep.subr.mxu0 0.0
    %392 = vmatpush1.xpose.msra.mxu0 0.0
    %393 = vmatprep.subr.mxu0 0.0
    %394 = vmatpush1.xpose.msra.mxu0 0.0
    %395 = vmatprep.subr.mxu0 0.0
    %396 = vmatpush1.xpose.msra.mxu0 0.0
    %397 = vmatprep.subr.mxu0 0.0
    %398 = vmatpush1.xpose.msra.mxu0 0.0
    %399 = vmatprep.subr.mxu0 0.0
    %400 = vmatpush1.xpose.msra.mxu0 0.0
    %401 = vmatprep.subr.mxu0 0.0
    %402 = vmatpush1.xpose.msra.mxu0 0.0
    %403 = vmatprep.subr.mxu0 0.0
    %404 = vmatpush1.xpose.msra.mxu0 0.0
    %405 = vmatprep.subr.mxu0 0.0
    %406 = vmatpush1.xpose.msra.mxu0 0.0
    %407 = vmatprep.mubr.f32.mxu0 0.0
    %408 = vmatmul.mubr.f32.gmra.mrb[0].mxu0 %v104
    %v409 = vpop.f32.mrb[0].mxu0
    %v410 = vadd.f32 %v100, %v409
    %v411 = vpop.f32.mrb[0].mxu0
    %412 = vmatprep.mubr.f32.mxu0 0.0
    %413 = vmatmul.mubr.f32.gmra.mrb[0].mxu0 %v107
    %v414 = vpop.f32.mrb[0].mxu0
    %v415 = vadd.f32 %v100, %v414
    %v416 = vpop.f32.mrb[0].mxu0
    %417 = vmatprep.mubr.f32.mxu0 0.0
    %418 = vmatmul.mubr.f32.gmra.mrb[0].mxu0 %v110
    %v419 = vpop.f32.mrb[0].mxu0
    %v420 = vadd.f32 %v100, %v419
    %v421 = vpop.f32.mrb[0].mxu0
    %422 = vmatprep.mubr.f32.mxu0 0.0
    %423 = vmatmul.mubr.f32.gmra.mrb[0].mxu0 %v113
    %v424 = vpop.f32.mrb[0].mxu0
    %v425 = vadd.f32 %v100, %v424
    %v426 = vpop.f32.mrb[0].mxu0
    %427 = vmatprep.mubr.f32.mxu0 0.0
    %428 = vmatmul.mubr.f32.gmra.mrb[0].mxu0 %v116
    %v429 = vpop.f32.mrb[0].mxu0
    %v430 = vadd.f32 %v100, %v429
    %v431 = vpop.f32.mrb[0].mxu0
    %432 = vmatprep.mubr.f32.mxu0 0.0
    %433 = vmatmul.mubr.f32.gmra.mrb[0].mxu0 %v119
    %v434 = vpop.f32.mrb[0].mxu0
    %v435 = vadd.f32 %v100, %v434
    %v436 = vpop.f32.mrb[0].mxu0
    %437 = vmatprep.mubr.f32.mxu0 0.0
    %438 = vmatmul.mubr.f32.gmra.mrb[0].mxu0 %v122
    %v439 = vpop.f32.mrb[0].mxu0
    %v440 = vadd.f32 %v100, %v439
    %v441 = vpop.f32.mrb[0].mxu0
    %442 = vmatprep.mubr.f32.mxu0 0.0
    %443 = vmatmul.mubr.f32.gmra.mrb[0].mxu0 %v125
    %v444 = vpop.f32.mrb[0].mxu0
    %v445 = vadd.f32 %v100, %v444
    %v446 = vpop.f32.mrb[0].mxu0
    %447 = vmatprep.mubr.f32.mxu0 0.0
    %448 = vmatmul.mubr.f32.gmra.mrb[0].mxu0 %v128
    %v449 = vpop.f32.mrb[0].mxu0
    %v450 = vadd.f32 %v100, %v449
    %v451 = vpop.f32.mrb[0].mxu0
    %452 = vmatprep.mubr.f32.mxu0 0.0
    %453 = vmatmul.mubr.f32.gmra.mrb[0].mxu0 %v131
    %v454 = vpop.f32.mrb[0].mxu0
    %v455 = vadd.f32 %v100, %v454
    %v456 = vpop.f32.mrb[0].mxu0
    %457 = vmatprep.mubr.f32.mxu0 0.0
    %458 = vmatmul.mubr.f32.gmra.mrb[0].mxu0 %v134
    %v459 = vpop.f32.mrb[0].mxu0
    %v460 = vadd.f32 %v100, %v459
    %v461 = vpop.f32.mrb[0].mxu0
    %462 = vmatprep.mubr.f32.mxu0 0.0
    %463 = vmatmul.mubr.f32.gmra.mrb[0].mxu0 %v137
    %v464 = vpop.f32.mrb[0].mxu0
    %v465 = vadd.f32 %v100, %v464
    %v466 = vpop.f32.mrb[0].mxu0
    %467 = vmatprep.mubr.f32.mxu0 0.0
    %468 = vmatmul.mubr.f32.gmra.mrb[0].mxu0 %v140
    %v469 = vpop.f32.mrb[0].mxu0
    %v470 = vadd.f32 %v100, %v469
    %v471 = vpop.f32.mrb[0].mxu0
    %472 = vmatprep.mubr.f32.mxu0 0.0
    %473 = vmatmul.mubr.f32.gmra.mrb[0].mxu0 %v143
    %v474 = vpop.f32.mrb[0].mxu0
    %v475 = vadd.f32 %v100, %v474
    %v476 = vpop.f32.mrb[0].mxu0
    %477 = vmatprep.mubr.f32.mxu0 0.0
    %478 = vmatmul.mubr.f32.gmra.mrb[0].mxu0 %v146
    %v479 = vpop.f32.mrb[0].mxu0
    %v480 = vadd.f32 %v100, %v479
    %v481 = vpop.f32.mrb[0].mxu0
    %482 = vmatprep.mubr.f32.mxu0 0.0
    %483 = vmatmul.mubr.f32.gmra.mrb[0].mxu0 %v149
    %v484 = vpop.f32.mrb[0].mxu0
    %v485 = vadd.f32 %v100, %v484
    %v486 = vpop.f32.mrb[0].mxu0
    %487 = vmatprep.mubr.f32.mxu0 0.0
    %488 = vmatmul.mubr.f32.gmra.mrb[0].mxu0 %v152
    %v489 = vpop.f32.mrb[0].mxu0
    %v490 = vadd.f32 %v100, %v489
    %v491 = vpop.f32.mrb[0].mxu0
    %492 = vmatprep.mubr.f32.mxu0 0.0
    %493 = vmatmul.mubr.f32.gmra.mrb[0].mxu0 %v155
    %v494 = vpop.f32.mrb[0].mxu0
    %v495 = vadd.f32 %v100, %v494
    %v496 = vpop.f32.mrb[0].mxu0
    %497 = vmatprep.mubr.f32.mxu0 0.0
    %498 = vmatmul.mubr.f32.gmra.mrb[0].mxu0 %v158
    %v499 = vpop.f32.mrb[0].mxu0
    %v500 = vadd.f32 %v100, %v499
    %v501 = vpop.f32.mrb[0].mxu0
    %502 = vmatprep.mubr.f32.mxu0 0.0
    %503 = vmatmul.mubr.f32.gmra.mrb[0].mxu0 %v161
    %v504 = vpop.f32.mrb[0].mxu0
    %v505 = vadd.f32 %v100, %v504
    %v506 = vpop.f32.mrb[0].mxu0
    %507 = vmatprep.mubr.f32.mxu0 0.0
    %508 = vmatmul.mubr.f32.gmra.mrb[0].mxu0 %v164
    %v509 = vpop.f32.mrb[0].mxu0
    %v510 = vadd.f32 %v100, %v509
    %v511 = vpop.f32.mrb[0].mxu0
    %512 = vmatprep.mubr.f32.mxu0 0.0
    %513 = vmatmul.mubr.f32.gmra.mrb[0].mxu0 %v167
    %v514 = vpop.f32.mrb[0].mxu0
    %v515 = vadd.f32 %v100, %v514
    %v516 = vpop.f32.mrb[0].mxu0
    %517 = vmatprep.mubr.f32.mxu0 0.0
    %518 = vmatmul.mubr.f32.gmra.mrb[0].mxu0 %v170
    %v519 = vpop.f32.mrb[0].mxu0
    %v520 = vadd.f32 %v100, %v519
    %v521 = vpop.f32.mrb[0].mxu0
    %522 = vmatprep.mubr.f32.mxu0 0.0
    %523 = vmatmul.mubr.f32.gmra.mrb[0].mxu0 %v173
    %v524 = vpop.f32.mrb[0].mxu0
    %v525 = vadd.f32 %v100, %v524
    %v526 = vpop.f32.mrb[0].mxu0
    %527 = vmatprep.mubr.f32.mxu0 0.0
    %528 = vmatmul.mubr.f32.gmra.mrb[0].mxu0 %v176
    %v529 = vpop.f32.mrb[0].mxu0
    %v530 = vadd.f32 %v100, %v529
    %v531 = vpop.f32.mrb[0].mxu0
    %532 = vmatprep.mubr.f32.mxu0 0.0
    %533 = vmatmul.mubr.f32.gmra.mrb[0].mxu0 %v179
    %v534 = vpop.f32.mrb[0].mxu0
    %v535 = vadd.f32 %v100, %v534
    %v536 = vpop.f32.mrb[0].mxu0
    %537 = vmatprep.mubr.f32.mxu0 0.0
    %538 = vmatmul.mubr.f32.gmra.mrb[0].mxu0 %v182
    %v539 = vpop.f32.mrb[0].mxu0
    %v540 = vadd.f32 %v100, %v539
    %v541 = vpop.f32.mrb[0].mxu0
    %542 = vmatprep.mubr.f32.mxu0 0.0
    %543 = vmatmul.mubr.f32.gmra.mrb[0].mxu0 %v185
    %v544 = vpop.f32.mrb[0].mxu0
    %v545 = vadd.f32 %v100, %v544
    %v546 = vpop.f32.mrb[0].mxu0
    %547 = vmatprep.mubr.f32.mxu0 0.0
    %548 = vmatmul.mubr.f32.gmra.mrb[0].mxu0 %v188
    %v549 = vpop.f32.mrb[0].mxu0
    %v550 = vadd.f32 %v100, %v549
    %v551 = vpop.f32.mrb[0].mxu0
    %552 = vmatprep.mubr.f32.mxu0 0.0
    %553 = vmatmul.mubr.f32.gmra.mrb[0].mxu0 %v191
    %v554 = vpop.f32.mrb[0].mxu0
    %v555 = vadd.f32 %v100, %v554
    %v556 = vpop.f32.mrb[0].mxu0
    %557 = vmatprep.mubr.f32.mxu0 0.0
    %558 = vmatmul.mubr.f32.gmra.mrb[0].mxu0 %v194
    %v559 = vpop.f32.mrb[0].mxu0
    %v560 = vadd.f32 %v100, %v559
    %v561 = vpop.f32.mrb[0].mxu0
    %562 = vmatprep.mubr.f32.mxu0 0.0
    %563 = vmatmul.mubr.f32.gmra.mrb[0].mxu0 %v197
    %v564 = vpop.f32.mrb[0].mxu0
    %v565 = vadd.f32 %v100, %v564
    %v566 = vpop.f32.mrb[0].mxu0
    %567 = vmatprep.mubr.f32.mxu0 0.0
    %568 = vmatmul.mubr.f32.gmra.mrb[0].mxu0 %v200
    %v569 = vpop.f32.mrb[0].mxu0
    %v570 = vadd.f32 %v100, %v569
    %v571 = vpop.f32.mrb[0].mxu0
    %572 = vmatprep.mubr.f32.mxu0 0.0
    %573 = vmatmul.mubr.f32.gmra.mrb[0].mxu0 %v203
    %v574 = vpop.f32.mrb[0].mxu0
    %v575 = vadd.f32 %v100, %v574
    %v576 = vpop.f32.mrb[0].mxu0
    %577 = vmatprep.mubr.f32.mxu0 0.0
    %578 = vmatmul.mubr.f32.gmra.mrb[0].mxu0 %v206
    %v579 = vpop.f32.mrb[0].mxu0
    %v580 = vadd.f32 %v100, %v579
    %v581 = vpop.f32.mrb[0].mxu0
    %582 = vmatprep.mubr.f32.mxu0 0.0
    %583 = vmatmul.mubr.f32.gmra.mrb[0].mxu0 %v209
    %v584 = vpop.f32.mrb[0].mxu0
    %v585 = vadd.f32 %v100, %v584
    %v586 = vpop.f32.mrb[0].mxu0
    %587 = vmatprep.mubr.f32.mxu0 0.0
    %588 = vmatmul.mubr.f32.gmra.mrb[0].mxu0 %v212
    %v589 = vpop.f32.mrb[0].mxu0
    %v590 = vadd.f32 %v100, %v589
    %v591 = vpop.f32.mrb[0].mxu0
    %592 = vmatprep.mubr.f32.mxu0 0.0
    %593 = vmatmul.mubr.f32.gmra.mrb[0].mxu0 %v215
    %v594 = vpop.f32.mrb[0].mxu0
    %v595 = vadd.f32 %v100, %v594
    %v596 = vpop.f32.mrb[0].mxu0
    %597 = vmatprep.mubr.f32.mxu0 0.0
    %598 = vmatmul.mubr.f32.gmra.mrb[0].mxu0 %v218
    %v599 = vpop.f32.mrb[0].mxu0
    %v600 = vadd.f32 %v100, %v599
    %v601 = vpop.f32.mrb[0].mxu0
    %602 = vmatprep.mubr.f32.mxu0 0.0
    %603 = vmatmul.mubr.f32.gmra.mrb[0].mxu0 %v221
    %v604 = vpop.f32.mrb[0].mxu0
    %v605 = vadd.f32 %v100, %v604
    %v606 = vpop.f32.mrb[0].mxu0
    %607 = vmatprep.mubr.f32.mxu0 0.0
    %608 = vmatmul.mubr.f32.gmra.mrb[0].mxu0 %v224
    %v609 = vpop.f32.mrb[0].mxu0
    %v610 = vadd.f32 %v100, %v609
    %v611 = vpop.f32.mrb[0].mxu0
    %612 = vmatprep.mubr.f32.mxu0 0.0
    %613 = vmatmul.mubr.f32.gmra.mrb[0].mxu0 %v227
    %v614 = vpop.f32.mrb[0].mxu0
    %v615 = vadd.f32 %v100, %v614
    %v616 = vpop.f32.mrb[0].mxu0
    %617 = vmatprep.mubr.f32.mxu0 0.0
    %618 = vmatmul.mubr.f32.gmra.mrb[0].mxu0 %v230
    %v619 = vpop.f32.mrb[0].mxu0
    %v620 = vadd.f32 %v100, %v619
    %v621 = vpop.f32.mrb[0].mxu0
    %622 = vmatprep.mubr.f32.mxu0 0.0
    %623 = vmatmul.mubr.f32.gmra.mrb[0].mxu0 %v233
    %v624 = vpop.f32.mrb[0].mxu0
    %v625 = vadd.f32 %v100, %v624
    %v626 = vpop.f32.mrb[0].mxu0
    %627 = vmatprep.mubr.f32.mxu0 0.0
    %628 = vmatmul.mubr.f32.gmra.mrb[0].mxu0 %v236
    %v629 = vpop.f32.mrb[0].mxu0
    %v630 = vadd.f32 %v100, %v629
    %v631 = vpop.f32.mrb[0].mxu0
    %632 = vmatprep.mubr.f32.mxu0 0.0
    %633 = vmatmul.mubr.f32.gmra.mrb[0].mxu0 %v239
    %v634 = vpop.f32.mrb[0].mxu0
    %v635 = vadd.f32 %v100, %v634
    %v636 = vpop.f32.mrb[0].mxu0
    %637 = vmatprep.mubr.f32.mxu0 0.0
    %638 = vmatmul.mubr.f32.gmra.mrb[0].mxu0 %v242
    %v639 = vpop.f32.mrb[0].mxu0
    %v640 = vadd.f32 %v100, %v639
    %v641 = vpop.f32.mrb[0].mxu0
    %642 = vmatprep.mubr.f32.mxu0 0.0
    %643 = vmatmul.mubr.f32.gmra.mrb[0].mxu0 %v245
    %v644 = vpop.f32.mrb[0].mxu0
    %v645 = vadd.f32 %v100, %v644
    %v646 = vpop.f32.mrb[0].mxu0
    %647 = vmatprep.mubr.f32.mxu0 0.0
    %648 = vmatmul.mubr.f32.gmra.mrb[0].mxu0 %v248
    %v649 = vpop.f32.mrb[0].mxu0
    %v650 = vadd.f32 %v100, %v649
    %v651 = vpop.f32.mrb[0].mxu0
    %652 = vmatprep.mubr.f32.mxu0 0.0
    %653 = vmatmul.mubr.f32.gmra.mrb[0].mxu0 %v251
    %v654 = vpop.f32.mrb[0].mxu0
    %v655 = vadd.f32 %v100, %v654
    %v656 = vpop.f32.mrb[0].mxu0
    %657 = vmatprep.mubr.f32.mxu0 0.0
    %658 = vmatmul.mubr.f32.gmra.mrb[0].mxu0 %v254
    %v659 = vpop.f32.mrb[0].mxu0
    %v660 = vadd.f32 %v100, %v659
    %v661 = vpop.f32.mrb[0].mxu0
    %662 = vmatprep.mubr.f32.mxu0 0.0
    %663 = vmatmul.mubr.f32.gmra.mrb[0].mxu0 %v257
    %v664 = vpop.f32.mrb[0].mxu0
    %v665 = vadd.f32 %v100, %v664
    %v666 = vpop.f32.mrb[0].mxu0
    %667 = vmatprep.mubr.f32.mxu0 0.0
    %668 = vmatmul.mubr.f32.gmra.mrb[0].mxu0 %v260
    %v669 = vpop.f32.mrb[0].mxu0
    %v670 = vadd.f32 %v100, %v669
    %v671 = vpop.f32.mrb[0].mxu0
    %672 = vmatprep.mubr.f32.mxu0 0.0
    %673 = vmatmul.mubr.f32.gmra.mrb[0].mxu0 %v263
    %v674 = vpop.f32.mrb[0].mxu0
    %v675 = vadd.f32 %v100, %v674
    %v676 = vpop.f32.mrb[0].mxu0
    %677 = vmatprep.mubr.f32.mxu0 0.0
    %678 = vmatmul.mubr.f32.gmra.mrb[0].mxu0 %v266
    %v679 = vpop.f32.mrb[0].mxu0
    %v680 = vadd.f32 %v100, %v679
    %v681 = vpop.f32.mrb[0].mxu0
    %682 = vmatprep.mubr.f32.mxu0 0.0
    %683 = vmatmul.mubr.f32.gmra.mrb[0].mxu0 %v269
    %v684 = vpop.f32.mrb[0].mxu0
    %v685 = vadd.f32 %v100, %v684
    %v686 = vpop.f32.mrb[0].mxu0
    %687 = vmatprep.mubr.f32.mxu0 0.0
    %688 = vmatmul.mubr.f32.gmra.mrb[0].mxu0 %v272
    %v689 = vpop.f32.mrb[0].mxu0
    %v690 = vadd.f32 %v100, %v689
    %v691 = vpop.f32.mrb[0].mxu0
    %692 = vmatprep.mubr.f32.mxu0 0.0
    %693 = vmatmul.mubr.f32.gmra.mrb[0].mxu0 %v275
    %v694 = vpop.f32.mrb[0].mxu0
    %v695 = vadd.f32 %v100, %v694
    %v696 = vpop.f32.mrb[0].mxu0
    %697 = vmatprep.mubr.f32.mxu0 0.0
    %698 = vmatmul.mubr.f32.gmra.mrb[0].mxu0 %v278
    %v699 = vpop.f32.mrb[0].mxu0
    %v700 = vadd.f32 %v100, %v699
    %v701 = vpop.f32.mrb[0].mxu0
    %702 = vmatprep.mubr.f32.mxu0 0.0
    %703 = vmatmul.mubr.f32.gmra.mrb[0].mxu0 %v281
    %v704 = vpop.f32.mrb[0].mxu0
    %v705 = vadd.f32 %v100, %v704
    %v706 = vpop.f32.mrb[0].mxu0
    %707 = vmatprep.mubr.f32.mxu0 0.0
    %708 = vmatmul.mubr.f32.gmra.mrb[0].mxu0 %v284
    %v709 = vpop.f32.mrb[0].mxu0
    %v710 = vadd.f32 %v100, %v709
    %v711 = vpop.f32.mrb[0].mxu0
    %712 = vmatprep.mubr.f32.mxu0 0.0
    %713 = vmatmul.mubr.f32.gmra.mrb[0].mxu0 %v287
    %v714 = vpop.f32.mrb[0].mxu0
    %v715 = vadd.f32 %v100, %v714
    %v716 = vpop.f32.mrb[0].mxu0
    %717 = vmatprep.mubr.f32.mxu0 0.0
    %718 = vmatmul.mubr.f32.gmra.mrb[0].mxu0 %v290
    %v719 = vpop.f32.mrb[0].mxu0
    %v720 = vadd.f32 %v100, %v719
    %v721 = vpop.f32.mrb[0].mxu0
    %722 = vmatprep.mubr.f32.mxu0 0.0
    %723 = vmatmul.mubr.f32.gmra.mrb[0].mxu0 %v293
    %v724 = vpop.f32.mrb[0].mxu0
    %v725 = vadd.f32 %v100, %v724
    %v726 = vpop.f32.mrb[0].mxu0
    %727 = vdwg.mxu0
    %vm728 = vcmp.gt.f32.partialorder %v410, 0.0
    %vm729 = vcmp.gt.f32.partialorder %v415, 0.0
    %vm730 = vcmp.gt.f32.partialorder %v420, 0.0
    %vm731 = vcmp.gt.f32.partialorder %v425, 0.0
    %vm732 = vcmp.gt.f32.partialorder %v430, 0.0
    %vm733 = vcmp.gt.f32.partialorder %v435, 0.0
    %vm734 = vcmp.gt.f32.partialorder %v440, 0.0
    %vm735 = vcmp.gt.f32.partialorder %v445, 0.0
    %vm736 = vcmp.gt.f32.partialorder %v450, 0.0
    %vm737 = vcmp.gt.f32.partialorder %v455, 0.0
    %vm738 = vcmp.gt.f32.partialorder %v460, 0.0
    %vm739 = vcmp.gt.f32.partialorder %v465, 0.0
    %vm740 = vcmp.gt.f32.partialorder %v470, 0.0
    %vm741 = vcmp.gt.f32.partialorder %v475, 0.0
    %vm742 = vcmp.gt.f32.partialorder %v480, 0.0
    %vm743 = vcmp.gt.f32.partialorder %v485, 0.0
    %vm744 = vcmp.gt.f32.partialorder %v490, 0.0
    %vm745 = vcmp.gt.f32.partialorder %v495, 0.0
    %vm746 = vcmp.gt.f32.partialorder %v500, 0.0
    %vm747 = vcmp.gt.f32.partialorder %v505, 0.0
    %vm748 = vcmp.gt.f32.partialorder %v510, 0.0
    %vm749 = vcmp.gt.f32.partialorder %v515, 0.0
    %vm750 = vcmp.gt.f32.partialorder %v520, 0.0
    %vm751 = vcmp.gt.f32.partialorder %v525, 0.0
    %vm752 = vcmp.gt.f32.partialorder %v530, 0.0
    %vm753 = vcmp.gt.f32.partialorder %v535, 0.0
    %vm754 = vcmp.gt.f32.partialorder %v540, 0.0
    %vm755 = vcmp.gt.f32.partialorder %v545, 0.0
    %vm756 = vcmp.gt.f32.partialorder %v550, 0.0
    %vm757 = vcmp.gt.f32.partialorder %v555, 0.0
    %vm758 = vcmp.gt.f32.partialorder %v560, 0.0
    %vm759 = vcmp.gt.f32.partialorder %v565, 0.0
    %vm760 = vcmp.gt.f32.partialorder %v570, 0.0
    %vm761 = vcmp.gt.f32.partialorder %v575, 0.0
    %vm762 = vcmp.gt.f32.partialorder %v580, 0.0
    %vm763 = vcmp.gt.f32.partialorder %v585, 0.0
    %vm764 = vcmp.gt.f32.partialorder %v590, 0.0
    %vm765 = vcmp.gt.f32.partialorder %v595, 0.0
    %vm766 = vcmp.gt.f32.partialorder %v600, 0.0
    %vm767 = vcmp.gt.f32.partialorder %v605, 0.0
    %vm768 = vcmp.gt.f32.partialorder %v610, 0.0
    %vm769 = vcmp.gt.f32.partialorder %v615, 0.0
    %vm770 = vcmp.gt.f32.partialorder %v620, 0.0
    %vm771 = vcmp.gt.f32.partialorder %v625, 0.0
    %vm772 = vcmp.gt.f32.partialorder %v630, 0.0
    %vm773 = vcmp.gt.f32.partialorder %v635, 0.0
    %vm774 = vcmp.gt.f32.partialorder %v640, 0.0
    %vm775 = vcmp.gt.f32.partialorder %v645, 0.0
    %vm776 = vcmp.gt.f32.partialorder %v650, 0.0
    %vm777 = vcmp.gt.f32.partialorder %v655, 0.0
    %vm778 = vcmp.gt.f32.partialorder %v660, 0.0
    %vm779 = vcmp.gt.f32.partialorder %v665, 0.0
    %vm780 = vcmp.gt.f32.partialorder %v670, 0.0
    %vm781 = vcmp.gt.f32.partialorder %v675, 0.0
    %vm782 = vcmp.gt.f32.partialorder %v680, 0.0
    %vm783 = vcmp.gt.f32.partialorder %v685, 0.0
    %vm784 = vcmp.gt.f32.partialorder %v690, 0.0
    %vm785 = vcmp.gt.f32.partialorder %v695, 0.0
    %vm786 = vcmp.gt.f32.partialorder %v700, 0.0
    %vm787 = vcmp.gt.f32.partialorder %v705, 0.0
    %vm788 = vcmp.gt.f32.partialorder %v710, 0.0
    %vm789 = vcmp.gt.f32.partialorder %v715, 0.0
    %vm790 = vcmp.gt.f32.partialorder %v720, 0.0
    %vm791 = vcmp.gt.f32.partialorder %v725, 0.0
    %v792 = vmul.f32 %v410, 0.1
    %v793 = vmul.f32 %v415, 0.1
    %v794 = vmul.f32 %v420, 0.1
    %v795 = vmul.f32 %v425, 0.1
    %v796 = vmul.f32 %v430, 0.1
    %v797 = vmul.f32 %v435, 0.1
    %v798 = vmul.f32 %v440, 0.1
    %v799 = vmul.f32 %v445, 0.1
    %v800 = vmul.f32 %v450, 0.1
    %v801 = vmul.f32 %v455, 0.1
    %v802 = vmul.f32 %v460, 0.1
    %v803 = vmul.f32 %v465, 0.1
    %v804 = vmul.f32 %v470, 0.1
    %v805 = vmul.f32 %v475, 0.1
    %v806 = vmul.f32 %v480, 0.1
    %v807 = vmul.f32 %v485, 0.1
    %v808 = vmul.f32 %v490, 0.1
    %v809 = vmul.f32 %v495, 0.1
    %v810 = vmul.f32 %v500, 0.1
    %v811 = vmul.f32 %v505, 0.1
    %v812 = vmul.f32 %v510, 0.1
    %v813 = vmul.f32 %v515, 0.1
    %v814 = vmul.f32 %v520, 0.1
    %v815 = vmul.f32 %v525, 0.1
    %v816 = vmul.f32 %v530, 0.1
    %v817 = vmul.f32 %v535, 0.1
    %v818 = vmul.f32 %v540, 0.1
    %v819 = vmul.f32 %v545, 0.1
    %v820 = vmul.f32 %v550, 0.1
    %v821 = vmul.f32 %v555, 0.1
    %v822 = vmul.f32 %v560, 0.1
    %v823 = vmul.f32 %v565, 0.1
    %v824 = vmul.f32 %v570, 0.1
    %v825 = vmul.f32 %v575, 0.1
    %v826 = vmul.f32 %v580, 0.1
    %v827 = vmul.f32 %v585, 0.1
    %v828 = vmul.f32 %v590, 0.1
    %v829 = vmul.f32 %v595, 0.1
    %v830 = vmul.f32 %v600, 0.1
    %v831 = vmul.f32 %v605, 0.1
    %v832 = vmul.f32 %v610, 0.1
    %v833 = vmul.f32 %v615, 0.1
    %v834 = vmul.f32 %v620, 0.1
    %v835 = vmul.f32 %v625, 0.1
    %v836 = vmul.f32 %v630, 0.1
    %v837 = vmul.f32 %v635, 0.1
    %v838 = vmul.f32 %v640, 0.1
    %v839 = vmul.f32 %v645, 0.1
    %v840 = vmul.f32 %v650, 0.1
    %v841 = vmul.f32 %v655, 0.1
    %v842 = vmul.f32 %v660, 0.1
    %v843 = vmul.f32 %v665, 0.1
    %v844 = vmul.f32 %v670, 0.1
    %v845 = vmul.f32 %v675, 0.1
    %v846 = vmul.f32 %v680, 0.1
    %v847 = vmul.f32 %v685, 0.1
    %v848 = vmul.f32 %v690, 0.1
    %v849 = vmul.f32 %v695, 0.1
    %v850 = vmul.f32 %v700, 0.1
    %v851 = vmul.f32 %v705, 0.1
    %v852 = vmul.f32 %v710, 0.1
    %v853 = vmul.f32 %v715, 0.1
    %v854 = vmul.f32 %v720, 0.1
    %v855 = vmul.f32 %v725, 0.1
    %v856 = vsel %vm728, %v410, %v792
    %v857 = vsel %vm729, %v415, %v793
    %v858 = vsel %vm730, %v420, %v794
    %v859 = vsel %vm731, %v425, %v795
    %v860 = vsel %vm732, %v430, %v796
    %v861 = vsel %vm733, %v435, %v797
    %v862 = vsel %vm734, %v440, %v798
    %v863 = vsel %vm735, %v445, %v799
    %v864 = vsel %vm736, %v450, %v800
    %v865 = vsel %vm737, %v455, %v801
    %v866 = vsel %vm738, %v460, %v802
    %v867 = vsel %vm739, %v465, %v803
    %v868 = vsel %vm740, %v470, %v804
    %v869 = vsel %vm741, %v475, %v805
    %v870 = vsel %vm742, %v480, %v806
    %v871 = vsel %vm743, %v485, %v807
    %v872 = vsel %vm744, %v490, %v808
    %v873 = vsel %vm745, %v495, %v809
    %v874 = vsel %vm746, %v500, %v810
    %v875 = vsel %vm747, %v505, %v811
    %v876 = vsel %vm748, %v510, %v812
    %v877 = vsel %vm749, %v515, %v813
    %v878 = vsel %vm750, %v520, %v814
    %v879 = vsel %vm751, %v525, %v815
    %v880 = vsel %vm752, %v530, %v816
    %v881 = vsel %vm753, %v535, %v817
    %v882 = vsel %vm754, %v540, %v818
    %v883 = vsel %vm755, %v545, %v819
    %v884 = vsel %vm756, %v550, %v820
    %v885 = vsel %vm757, %v555, %v821
    %v886 = vsel %vm758, %v560, %v822
    %v887 = vsel %vm759, %v565, %v823
    %v888 = vsel %vm760, %v570, %v824
    %v889 = vsel %vm761, %v575, %v825
    %v890 = vsel %vm762, %v580, %v826
    %v891 = vsel %vm763, %v585, %v827
    %v892 = vsel %vm764, %v590, %v828
    %v893 = vsel %vm765, %v595, %v829
    %v894 = vsel %vm766, %v600, %v830
    %v895 = vsel %vm767, %v605, %v831
    %v896 = vsel %vm768, %v610, %v832
    %v897 = vsel %vm769, %v615, %v833
    %v898 = vsel %vm770, %v620, %v834
    %v899 = vsel %vm771, %v625, %v835
    %v900 = vsel %vm772, %v630, %v836
    %v901 = vsel %vm773, %v635, %v837
    %v902 = vsel %vm774, %v640, %v838
    %v903 = vsel %vm775, %v645, %v839
    %v904 = vsel %vm776, %v650, %v840
    %v905 = vsel %vm777, %v655, %v841
    %v906 = vsel %vm778, %v660, %v842
    %v907 = vsel %vm779, %v665, %v843
    %v908 = vsel %vm780, %v670, %v844
    %v909 = vsel %vm781, %v675, %v845
    %v910 = vsel %vm782, %v680, %v846
    %v911 = vsel %vm783, %v685, %v847
    %v912 = vsel %vm784, %v690, %v848
    %v913 = vsel %vm785, %v695, %v849
    %v914 = vsel %vm786, %v700, %v850
    %v915 = vsel %vm787, %v705, %v851
    %v916 = vsel %vm788, %v710, %v852
    %v917 = vsel %vm789, %v715, %v853
    %v918 = vsel %vm790, %v720, %v854
    %v919 = vsel %vm791, %v725, %v855
    %920 = vst [vmem:[#allocation2] sm:$0xff] %v856
    %921 = vst [vmem:[#allocation2 + $0x8] sm:$0xff] %v857
    %922 = vst [vmem:[#allocation2 + $0x10] sm:$0xff] %v858
    %923 = vst [vmem:[#allocation2 + $0x18] sm:$0xff] %v859
    %924 = vst [vmem:[#allocation2 + $0x20] sm:$0xff] %v860
    %925 = vst [vmem:[#allocation2 + $0x28] sm:$0xff] %v861
    %926 = vst [vmem:[#allocation2 + $0x30] sm:$0xff] %v862
    %927 = vst [vmem:[#allocation2 + $0x38] sm:$0xff] %v863
    %928 = vst [vmem:[#allocation2 + $0x40] sm:$0xff] %v864
    %929 = vst [vmem:[#allocation2 + $0x48] sm:$0xff] %v865
    %930 = vst [vmem:[#allocation2 + $0x50] sm:$0xff] %v866
    %931 = vst [vmem:[#allocation2 + $0x58] sm:$0xff] %v867
    %932 = vst [vmem:[#allocation2 + $0x60] sm:$0xff] %v868
    %933 = vst [vmem:[#allocation2 + $0x68] sm:$0xff] %v869
    %934 = vst [vmem:[#allocation2 + $0x70] sm:$0xff] %v870
    %935 = vst [vmem:[#allocation2 + $0x78] sm:$0xff] %v871
    %936 = vst [vmem:[#allocation2 + $0x80] sm:$0xff] %v872
    %937 = vst [vmem:[#allocation2 + $0x88] sm:$0xff] %v873
    %938 = vst [vmem:[#allocation2 + $0x90] sm:$0xff] %v874
    %939 = vst [vmem:[#allocation2 + $0x98] sm:$0xff] %v875
    %940 = vst [vmem:[#allocation2 + $0xa0] sm:$0xff] %v876
    %941 = vst [vmem:[#allocation2 + $0xa8] sm:$0xff] %v877
    %942 = vst [vmem:[#allocation2 + $0xb0] sm:$0xff] %v878
    %943 = vst [vmem:[#allocation2 + $0xb8] sm:$0xff] %v879
    %944 = vst [vmem:[#allocation2 + $0xc0] sm:$0xff] %v880
    %945 = vst [vmem:[#allocation2 + $0xc8] sm:$0xff] %v881
    %946 = vst [vmem:[#allocation2 + $0xd0] sm:$0xff] %v882
    %947 = vst [vmem:[#allocation2 + $0xd8] sm:$0xff] %v883
    %948 = vst [vmem:[#allocation2 + $0xe0] sm:$0xff] %v884
    %949 = vst [vmem:[#allocation2 + $0xe8] sm:$0xff] %v885
    %950 = vst [vmem:[#allocation2 + $0xf0] sm:$0xff] %v886
    %951 = vst [vmem:[#allocation2 + $0xf8] sm:$0xff] %v887
    %952 = vst [vmem:[#allocation2 + $0x100] sm:$0xff] %v888
    %953 = vst [vmem:[#allocation2 + $0x108] sm:$0xff] %v889
    %954 = vst [vmem:[#allocation2 + $0x110] sm:$0xff] %v890
    %955 = vst [vmem:[#allocation2 + $0x118] sm:$0xff] %v891
    %956 = vst [vmem:[#allocation2 + $0x120] sm:$0xff] %v892
    %957 = vst [vmem:[#allocation2 + $0x128] sm:$0xff] %v893
    %958 = vst [vmem:[#allocation2 + $0x130] sm:$0xff] %v894
    %959 = vst [vmem:[#allocation2 + $0x138] sm:$0xff] %v895
    %960 = vst [vmem:[#allocation2 + $0x140] sm:$0xff] %v896
    %961 = vst [vmem:[#allocation2 + $0x148] sm:$0xff] %v897
    %962 = vst [vmem:[#allocation2 + $0x150] sm:$0xff] %v898
    %963 = vst [vmem:[#allocation2 + $0x158] sm:$0xff] %v899
    %964 = vst [vmem:[#allocation2 + $0x160] sm:$0xff] %v900
    %965 = vst [vmem:[#allocation2 + $0x168] sm:$0xff] %v901
    %966 = vst [vmem:[#allocation2 + $0x170] sm:$0xff] %v902
    %967 = vst [vmem:[#allocation2 + $0x178] sm:$0xff] %v903
    %968 = vst [vmem:[#allocation2 + $0x180] sm:$0xff] %v904
    %969 = vst [vmem:[#allocation2 + $0x188] sm:$0xff] %v905
    %970 = vst [vmem:[#allocation2 + $0x190] sm:$0xff] %v906
    %971 = vst [vmem:[#allocation2 + $0x198] sm:$0xff] %v907
    %972 = vst [vmem:[#allocation2 + $0x1a0] sm:$0xff] %v908
    %973 = vst [vmem:[#allocation2 + $0x1a8] sm:$0xff] %v909
    %974 = vst [vmem:[#allocation2 + $0x1b0] sm:$0xff] %v910
    %975 = vst [vmem:[#allocation2 + $0x1b8] sm:$0xff] %v911
    %976 = vst [vmem:[#allocation2 + $0x1c0] sm:$0xff] %v912
    %977 = vst [vmem:[#allocation2 + $0x1c8] sm:$0xff] %v913
    %978 = vst [vmem:[#allocation2 + $0x1d0] sm:$0xff] %v914
    %979 = vst [vmem:[#allocation2 + $0x1d8] sm:$0xff] %v915
    %980 = vst [vmem:[#allocation2 + $0x1e0] sm:$0xff] %v916
    %981 = vst [vmem:[#allocation2 + $0x1e8] sm:$0xff] %v917
    %982 = vst [vmem:[#allocation2 + $0x1f0] sm:$0xff] %v918
    %983 = vst [vmem:[#allocation2 + $0x1f8] sm:$0xff] %v919
    // Predicated region
    $region14: #{tpu_custom_call.1} parent=1 // pred_check
      _
    $region15: #{tpu_custom_call.1} parent=1 // pred_check_branch
      %985 = sbr.rel (0) target = $region17
    $region16: #{tpu_custom_call.1} parent=1 // pred_region
      %s987 = ssub.s32 8192, 8192
      %988 = vsyncadd [#allocation3], %s987
      %s989 = sshll.u32 [#allocation2], 4
      %s990 = int_to_ptr.vmem [resolvable:$true] %s989
      %995 = dma.vmem_to_hbm [thread:$0]  %s990, 8192, %s3, [#allocation3], 128, 128, 8
    $region17: #{tpu_custom_call.1} parent=1 // pred_fallthru
      _
    // Predicated region
    $region18: #{tpu_custom_call.1} parent=1 // pred_check
      _
    $region19: #{tpu_custom_call.1} parent=1 // pred_check_branch
      %997 = sbr.rel (0) target = $region21
    $region20: #{tpu_custom_call.1} parent=1 // pred_region
      %998 = dma.done [#allocation3], 8192
    $region21: #{tpu_custom_call.1} parent=1 // pred_fallthru
      _
    %999 = vsyncpa [#allocation3], 1

</llo_original>
